<compile_context>
chip_gen: v5e
topology: v5e:2x2
jax: 0.10.0
libtpu: 0.0.40
codegen_flags: <defaults>
</compile_context>

<pallas_src>
import jax
import jax.numpy as jnp
from jax.experimental import pallas as pl
from jax.experimental.pallas import tpu as pltpu


def _round_up(x, m):
    return ((x + m - 1) // m) * m


def _conv1x1_kernel(x_ref, w_ref, b_ref, o_ref):
    # x_ref: (BN, C_in, TL)  channels on sublanes, L on lanes
    # w_ref: (C_out, C_in)   resident across the whole grid
    # b_ref: (C_out, 1)      resident across the whole grid
    # o_ref: (BN, C_out, TL) lane-dense output tile (TL multiple of 128)
    w = w_ref[...]
    b = b_ref[...]
    bn = x_ref.shape[0]

    @pl.loop(0, bn)
    def _(i):
        acc = jnp.dot(w, x_ref[i], preferred_element_type=jnp.float32)
        o_ref[i] = (acc + b).astype(o_ref.dtype)


def _choose_tiles(N, C_in, C_out, L, target_bytes):
    """Pick (BN, TL) so each grid step moves ~target_bytes of HBM traffic."""
    bytes_per_lane = 4 * (C_in + C_out)          # x read + out write, f32
    L128 = _round_up(L, 128)
    TL = (target_bytes // bytes_per_lane) // 128 * 128
    TL = int(min(max(TL, 128), L128))            # lane-dense, <= full row
    BN = 1
    step_bytes = TL * bytes_per_lane
    if TL >= L128 and step_bytes < target_bytes:
        # One lane tile already covers the whole row: fold batch rows per step so
        # bytes/step stays near the target instead of overhead-dominated.
        BN = int(min(N, max(1, target_bytes // step_bytes)))
        # Keep >=2 grid steps (pipelining / v7x's two TensorCores) when splitting
        # still leaves a reasonably sized (>= target/2) step.
        if BN == N and N > 1 and (N // 2) * step_bytes >= target_bytes // 2:
            BN = _round_up(N, 2) // 2
    return BN, TL


def piecewise_convolution(x_ncl, weight, bias, *, target_bytes_per_step=4 * 1024 * 1024):
    """Conv1d(kernel_size=1, padding='same') forward.

    x_ncl : (N, C_in, L)      float32
    weight: (C_out, C_in, 1)  (PyTorch Conv1d weight shape) or (C_out, C_in)
    bias  : (C_out,)
    returns (N, C_out, L) float32
    """
    N, C_in, L = x_ncl.shape
    C_out = weight.shape[0]

    w_2d = weight[:, :, 0] if weight.ndim == 3 else weight   # (C_out, C_in)
    b_2d = bias.reshape(C_out, 1)                            # broadcasts over lanes

    BN, TL = _choose_tiles(N, C_in, C_out, L, target_bytes_per_step)
    grid = (pl.cdiv(N, BN), pl.cdiv(L, TL))

    cost = pl.CostEstimate(
        flops=2 * N * C_in * C_out * L,
        transcendentals=0,
        bytes_accessed=4 * (N * C_in * L + N * C_out * L + C_in * C_out + C_out),
    )

    return pl.pallas_call(
        _conv1x1_kernel,
        out_shape=jax.ShapeDtypeStruct((N, C_out, L), x_ncl.dtype),
        grid=grid,
        in_specs=[
            # x: BN batch rows, one L tile per step.
            pl.BlockSpec((BN, C_in, TL), lambda n, l: (n, 0, l)),
            # Weight and bias: constant index_map -> stay resident in VMEM.
            pl.BlockSpec((C_out, C_in), lambda n, l: (0, 0)),
            pl.BlockSpec((C_out, 1), lambda n, l: (0, 0)),
        ],
        out_specs=pl.BlockSpec((BN, C_out, TL), lambda n, l: (n, 0, l)),
        compiler_params=pltpu.CompilerParams(
            dimension_semantics=("parallel", "parallel"),
        ),
        cost_estimate=cost,
    )(x_ncl, w_2d, b_2d)


if __name__ == "__main__":
    key = jax.random.PRNGKey(0)
    k_x, k_w, k_b, k_x2, k_w2, k_b2 = jax.random.split(key, 6)

    # Case 1: shapes from the module spec (tiny L -> single partial lane tile).
    N, C_in, C_out, L = 2, 4, 8, 16
    x = jax.random.normal(k_x, (N, C_in, L), dtype=jnp.float32)
    weight = jax.random.normal(k_w, (C_out, C_in, 1), dtype=jnp.float32) * 0.1
    bias = jax.random.normal(k_b, (C_out,), dtype=jnp.float32) * 0.1

    out = jax.block_until_ready(piecewise_convolution(x, weight, bias))
    ref = jnp.einsum("oc,ncl->nol", weight[:, :, 0], x) + bias[None, :, None]
    assert out.shape == (N, C_out, L)
    assert jnp.allclose(out, ref, atol=1e-5, rtol=1e-5)

    # Case 2: ragged L (not a multiple of 128), odd channel counts, batch folding.
    N2, C_in2, C_out2, L2 = 3, 5, 7, 200
    x2 = jax.random.normal(k_x2, (N2, C_in2, L2), dtype=jnp.float32)
    w2 = jax.random.normal(k_w2, (C_out2, C_in2, 1), dtype=jnp.float32) * 0.1
    b2 = jax.random.normal(k_b2, (C_out2,), dtype=jnp.float32) * 0.1

    out2 = jax.block_until_ready(piecewise_convolution(x2, w2, b2))
    ref2 = jnp.einsum("oc,ncl->nol", w2[:, :, 0], x2) + b2[None, :, None]
    assert out2.shape == (N2, C_out2, L2)
    assert jnp.allclose(out2, ref2, atol=1e-5, rtol=1e-5)

    print("KERNEL_OK")
</pallas_src>

<mosaic_0001>
module attributes {stable_mosaic.version = 11 : i64} {
  func.func @_conv1x1_kernel(%arg0: i32, %arg1: i32, %arg2: memref<2x4x128xf32, #tpu.memory_space<vmem>>, %arg3: memref<8x4xf32, #tpu.memory_space<vmem>>, %arg4: memref<8x1xf32, #tpu.memory_space<vmem>>, %arg5: memref<2x8x128xf32, #tpu.memory_space<vmem>>) attributes {dimension_semantics = [#tpu.dimension_semantics<parallel>, #tpu.dimension_semantics<parallel>], iteration_bounds = array<i64: 1, 1>, scalar_prefetch = 0 : i64, scratch_operands = 0 : i64, tpu.core_type = #tpu.core_type<tc>, window_params = [{transform_indices = @transform_0, window_bounds = array<i64: 2, 4, 128>}, {pipeline_mode = #tpu.pipeline_mode<synchronous>, transform_indices = @transform_1, window_bounds = array<i64: 8, 4>}, {pipeline_mode = #tpu.pipeline_mode<synchronous>, transform_indices = @transform_2, window_bounds = array<i64: 8, 1>}, {transform_indices = @transform_3, window_bounds = array<i64: 2, 8, 128>}]} {
    %c0 = arith.constant 0 : index
    %c0_0 = arith.constant 0 : index
    %0 = vector.load %arg3[%c0, %c0_0] : memref<8x4xf32, #tpu.memory_space<vmem>>, vector<8x4xf32>
    %c0_1 = arith.constant 0 : index
    %c0_2 = arith.constant 0 : index
    %1 = vector.load %arg4[%c0_1, %c0_2] : memref<8x1xf32, #tpu.memory_space<vmem>>, vector<8x1xf32>
    %c0_i32 = arith.constant 0 : i32
    %c2_i32 = arith.constant 2 : i32
    %2 = arith.addi %c0_i32, %c2_i32 : i32
    %c1_i32 = arith.constant 1 : i32
    scf.for %arg6 = %c0_i32 to %2 step %c1_i32  : i32 {
      %c1_i32_4 = arith.constant 1 : i32
      %3 = arith.muli %arg6, %c1_i32_4 : i32
      %c0_i32_5 = arith.constant 0 : i32
      %4 = arith.addi %c0_i32_5, %3 : i32
      %5 = arith.index_cast %4 : i32 to index
      %c0_6 = arith.constant 0 : index
      %c0_7 = arith.constant 0 : index
      %6 = vector.load %arg2[%5, %c0_6, %c0_7] : memref<2x4x128xf32, #tpu.memory_space<vmem>>, vector<1x4x128xf32>
      %7 = vector.shape_cast %6 : vector<1x4x128xf32> to vector<4x128xf32>
      %cst = arith.constant dense<0.000000e+00> : vector<8x128xf32>
      %8 = tpu.matmul %0, %7, %cst {dimension_numbers = #tpu.dot_dimension_numbers<[1], [0], [0], [1], [0, 0, 1, 1], [], []>} : vector<8x4xf32>, vector<4x128xf32>, vector<8x128xf32> -> vector<8x128xf32>
      %9 = vector.broadcast %1 : vector<8x1xf32> to vector<8x128xf32>
      %10 = arith.addf %8, %9 : vector<8x128xf32>
      %11 = arith.index_cast %4 : i32 to index
      %c0_8 = arith.constant 0 : index
      %c0_9 = arith.constant 0 : index
      %12 = vector.load %arg5[%11, %c0_8, %c0_9] : memref<2x8x128xf32, #tpu.memory_space<vmem>>, vector<1x8x128xf32>
      %13 = vector.shape_cast %12 : vector<1x8x128xf32> to vector<8x128xf32>
      %14 = vector.shape_cast %10 : vector<8x128xf32> to vector<1x8x128xf32>
      tpu.vector_store %arg5[%11, %c0_8, %c0_9], %14 {strides = array<i32>} : memref<2x8x128xf32, #tpu.memory_space<vmem>>, vector<1x8x128xf32>,
    }
    %c2_i32_3 = arith.constant 2 : i32
    return
  }
  func.func @transform_0(%arg0: i32, %arg1: i32) -> (i32, i32, i32) {
    %c0_i32 = arith.constant 0 : i32
    %c0_i32_0 = arith.constant 0 : i32
    return %arg0, %c0_i32, %arg1 : i32, i32, i32
  }
  func.func @transform_1(%arg0: i32, %arg1: i32) -> (i32, i32) {
    %c0_i32 = arith.constant 0 : i32
    %c0_i32_0 = arith.constant 0 : i32
    %c0_i32_1 = arith.constant 0 : i32
    return %c0_i32, %c0_i32_0 : i32, i32
  }
  func.func @transform_2(%arg0: i32, %arg1: i32) -> (i32, i32) {
    %c0_i32 = arith.constant 0 : i32
    %c0_i32_0 = arith.constant 0 : i32
    %c0_i32_1 = arith.constant 0 : i32
    return %c0_i32, %c0_i32_0 : i32, i32
  }
  func.func @transform_3(%arg0: i32, %arg1: i32) -> (i32, i32, i32) {
    %c0_i32 = arith.constant 0 : i32
    %c0_i32_0 = arith.constant 0 : i32
    return %arg0, %c0_i32, %arg1 : i32, i32, i32
  }
}

</mosaic_0001>

<llo_original>
// kernel: tpu_custom_call.1
$region0: #{tpu_custom_call.1}
  #allocation0 [shape = 'u32[]', space=smem, size = 0x4, offset = 0x4, fixed_abs, tag = 'smem constant byte address 0x4 - core index']
  #allocation1 [shape = 'u32[72,128]{1,0:T(1,128)}', space=vmem, size = 0x9000, scoped, tag = 'internal scratch']
  %s0 = inlined_call_operand.vmem [shape: f32[2,4,16], index: 0, kind: input, shape index: {}]
  %s1 = inlined_call_operand.vmem [shape: f32[8,4], index: 1, kind: input, shape index: {}]
  %s2 = inlined_call_operand.vmem [shape: f32[8,1], index: 2, kind: input, shape index: {}]
  %s3 = inlined_call_operand.hbm [shape: f32[2,8,16], index: 3, kind: output, shape index: {}]
  %s4 = sld [smem:[#allocation0]]
  $region29: #{tpu_custom_call.1} parent=0
    _
  %s6 = ssub.s32 1, %s4
  %s7 = scalar_select 0, %s6, %s4
  $region1: #{tpu_custom_call.1} parent=0
    #allocation2 [shape = 'u8[8192]{0}', space=vmem, size = 0x2000, scoped, tag = 'output window, operand 0, single buffered']
    #allocation3 [shape = 's32[1]{0}', space=sflag, size = 0x4, scoped, tag = 'scoped memory for tpu_custom_call.1']
    %8 = vsyncpa [#allocation3], 0
    // Predicated region
    $region2: #{tpu_custom_call.1} parent=1 // pred_check
      _
    $region3: #{tpu_custom_call.1} parent=1 // pred_check_branch
      %10 = sbr.rel (0) target = $region5
    $region4: #{tpu_custom_call.1} parent=1 // pred_region
      _
    $region5: #{tpu_custom_call.1} parent=1 // pred_fallthru
      _
    // Predicated region
    $region6: #{tpu_custom_call.1} parent=1 // pred_check
      _
    $region7: #{tpu_custom_call.1} parent=1 // pred_check_branch
      %12 = sbr.rel (0) target = $region9
    $region8: #{tpu_custom_call.1} parent=1 // pred_region
      _
    $region9: #{tpu_custom_call.1} parent=1 // pred_fallthru
      _
    // Predicated region
    $region10: #{tpu_custom_call.1} parent=1 // pred_check
      _
    $region11: #{tpu_custom_call.1} parent=1 // pred_check_branch
      %14 = sbr.rel (0) target = $region13
    $region12: #{tpu_custom_call.1} parent=1 // pred_region
      _
    $region13: #{tpu_custom_call.1} parent=1 // pred_fallthru
      _
    %v15 = vld [vmem:[%s1] sm:$0xff]
    %v16 = vld [vmem:[%s2] sm:$0xff]
    loop: start=0, step=1, limit=2
    $region14: #{tpu_custom_call.1} parent=1 // loop_pre_header
      _
    $region15: #{tpu_custom_call.1} parent=1 // loop_header
      %s18 = sphi 0, %s22
      %p19 = scmp.ge.s32.totalorder %s18, 2
    $region16: #{tpu_custom_call.1} parent=1 // loop_header_branch
      %21 = sbr.rel (%p19) target = $region20
    $region17: #{tpu_custom_call.1} parent=1 // loop_body
      %s23 = smul.u32 %s18, 4
      %s24 = scalar_lea.vmem %s0, %s23
      %v25 = vld [vmem:[%s24] sm:$0xf]
      %27 = vset.pattern.permute.xlu0 0
      %28 = vperm.xlu0 %27, %v16
      %v29 = vpop.permute.xlu0 %28
      %vm31 = vcmask 31744
      %v33 = vsel %vm31, %v15, 0
      %vm35 = vcmask 1043456
      %v37 = vsel %vm35, %v25, 0
      %39 = vmatpush.msra.mxu0 0.0
      %40 = vmatpush.msra.mxu0 0.0
      %41 = vmatpush.msra.mxu0 0.0
      %42 = vmatpush.msra.mxu0 0.0
      %43 = vmatpush.msra.mxu0 0.0
      %44 = vmatpush.msra.mxu0 0.0
      %45 = vmatpush.msra.mxu0 0.0
      %46 = vmatpush.msra.mxu0 0.0
      %47 = vmatpush.msra.mxu0 0.0
      %48 = vmatpush.msra.mxu0 0.0
      %49 = vmatpush.msra.mxu0 0.0
      %50 = vmatpush.msra.mxu0 0.0
      %51 = vmatpush.msra.mxu0 0.0
      %52 = vmatpush.msra.mxu0 0.0
      %53 = vmatpush.msra.mxu0 0.0
      %54 = vmatpush.msra.mxu0 %v37
      %55 = vmatmul.f32.gmra.mxu0 %v33
      %v56 = vpop.f32.mrf.mxu0
      %v57 = vadd.f32 %v29, %v56
      %58 = vdwg.mxu0
      %s59 = smul.u32 %s18, 8
      %s60 = scalar_lea.vmem [#allocation2], %s59
      %61 = vst [vmem:[%s60] sm:$0xff] %v57
    $region18: #{tpu_custom_call.1} parent=1 // loop_footer
      %s22 = sadd.s32 1, %s18
    $region19: #{tpu_custom_call.1} parent=1 // loop_footer_branch
      %17 = sbr.rel target = $region15
    $region20: #{tpu_custom_call.1} parent=1 // loop_exit
      _
    // Predicated region
    $region21: #{tpu_custom_call.1} parent=1 // pred_check
      _
    $region22: #{tpu_custom_call.1} parent=1 // pred_check_branch
      %63 = sbr.rel (0) target = $region24
    $region23: #{tpu_custom_call.1} parent=1 // pred_region
      %65 = vsyncadd [#allocation3], 0
      %s66 = sshll.u32 [#allocation2], 4
      %s67 = int_to_ptr.vmem [resolvable:$true] %s66
      %s68 = sshll.u32 %s3, 4
      %s69 = int_to_ptr.hbm [resolvable:$true] %s68
      %74 = dma.vmem_to_hbm [thread:$0]  %s67, 256, %s69, [#allocation3], 128, 128, 8
    $region24: #{tpu_custom_call.1} parent=1 // pred_fallthru
      _
    // Predicated region
    $region25: #{tpu_custom_call.1} parent=1 // pred_check
      _
    $region26: #{tpu_custom_call.1} parent=1 // pred_check_branch
      %76 = sbr.rel (0) target = $region28
    $region27: #{tpu_custom_call.1} parent=1 // pred_region
      %78 = dma.done [#allocation3], 256
    $region28: #{tpu_custom_call.1} parent=1 // pred_fallthru
      _
    %79 = vsyncpa [#allocation3], 1

</llo_original>
